<compile_context>
chip_gen: v6e
topology: v6e:2x2x1
jax: 0.10.0
libtpu: 0.0.40
codegen_flags: <defaults>
</compile_context>

<pallas_src>
import jax
import jax.numpy as jnp
import numpy as np
from jax.experimental import pallas as pl
from jax.experimental.pallas import tpu as pltpu

BN_EPS = 1e-5
LEAKY_SLOPE = 0.01          # torch.nn.functional.leaky_relu default
MAX_BATCH_TILE = 512        # rows per grid step (85%+ of HBM roofline zone)


def _leaky_relu(x):
    # single VPU max instead of compare + select (valid for 0 < slope < 1)
    return jnp.maximum(x, LEAKY_SLOPE * x)


# ----------------------------- kernels -------------------------------------


def actor_kernel(x_ref, scale_ref, shift_ref,
                 w1_ref, b1_ref, w2_ref, b2_ref, w3_ref, b3_ref, out_ref):
    # Folded BatchNorm affine (full-batch stats precomputed in the wrapper).
    bn = x_ref[...] * scale_ref[...] + shift_ref[...]
    # bf16 MXU operands, f32 accumulation & elementwise math.
    h1 = _leaky_relu(jnp.dot(bn.astype(jnp.bfloat16), w1_ref[...],
                             preferred_element_type=jnp.float32) + b1_ref[...])
    h2 = _leaky_relu(jnp.dot(h1.astype(jnp.bfloat16), w2_ref[...],
                             preferred_element_type=jnp.float32) + b2_ref[...])
    h3 = jnp.dot(h2.astype(jnp.bfloat16), w3_ref[...],
                 preferred_element_type=jnp.float32) + b3_ref[...]
    out_ref[...] = jnp.tanh(h3).astype(out_ref.dtype)


def critic_kernel(x_ref, a_ref, scale_ref, shift_ref,
                  w1_ref, b1_ref, w2a_ref, w2b_ref, b2_ref,
                  w3_ref, b3_ref, out_ref):
    bn = x_ref[...] * scale_ref[...] + shift_ref[...]
    h1 = _leaky_relu(jnp.dot(bn.astype(jnp.bfloat16), w1_ref[...],
                             preferred_element_type=jnp.float32) + b1_ref[...])
    # cat(h1, a) @ W2  ==  h1 @ W2a + a @ W2b   (avoids in-kernel concat)
    h2 = _leaky_relu(
        jnp.dot(h1.astype(jnp.bfloat16), w2a_ref[...],
                preferred_element_type=jnp.float32)
        + jnp.dot(a_ref[...].astype(jnp.bfloat16), w2b_ref[...],
                  preferred_element_type=jnp.float32)
        + b2_ref[...])
    h3 = jnp.dot(h2.astype(jnp.bfloat16), w3_ref[...],
                 preferred_element_type=jnp.float32) + b3_ref[...]
    out_ref[...] = h3.astype(out_ref.dtype)


# ------------------------- params (init-time prep) --------------------------


def init_network_params(key, input_dim, hidden_in_dim, hidden_out_dim,
                        output_dim, actor=False, action_size=0):
    """Deterministic synthetic init mirroring the PyTorch module's init ranges.

    Weights are stored pre-transposed (in, out) in bf16 and the critic's W2 is
    pre-split, so the forward pass does zero layout work per call.
    """
    fc1_out = hidden_in_dim if actor else hidden_in_dim - action_size
    ks = jax.random.split(key, 6)

    def uni(k, shape, lim):
        return jax.random.uniform(k, shape, jnp.float32, -lim, lim)

    # hidden_init uses fan_in = weight.size()[0] (= out_features), per the module.
    w1 = uni(ks[0], (fc1_out, input_dim), 1.0 / np.sqrt(fc1_out))
    w2 = uni(ks[1], (hidden_out_dim, hidden_in_dim), 1.0 / np.sqrt(hidden_out_dim))
    w3 = uni(ks[2], (output_dim, hidden_out_dim), 0.001)
    # biases keep the default nn.Linear init: U(-1/sqrt(in_features), ...)
    b1 = uni(ks[3], (fc1_out,), 1.0 / np.sqrt(input_dim))
    b2 = uni(ks[4], (hidden_out_dim,), 1.0 / np.sqrt(hidden_in_dim))
    b3 = uni(ks[5], (output_dim,), 1.0 / np.sqrt(hidden_out_dim))
    gamma = jnp.ones((input_dim,), jnp.float32)   # input_norm.weight.fill_(1)
    beta = jnp.zeros((input_dim,), jnp.float32)   # input_norm.bias.fill_(0)

    row = lambda v: v.reshape(1, -1)
    bf16 = lambda v: v.astype(jnp.bfloat16)
    w1t, w2t, w3t = w1.T, w2.T, w3.T              # transposed ONCE here

    arrays = dict(gamma=row(gamma), beta=row(beta),
                  w1t=bf16(w1t), b1=row(b1), b2=row(b2),
                  w3t=bf16(w3t), b3=row(b3))
    if actor:
        arrays["w2t"] = bf16(w2t)
    else:
        arrays["w2a"] = bf16(w2t[:fc1_out, :])    # acts on h1
        arrays["w2b"] = bf16(w2t[fc1_out:, :])    # acts on the action
    return dict(arrays=arrays, actor=actor, fc1_out=fc1_out)


# ------------------------------ forwards ------------------------------------


def _const_spec(shape):
    # Resident operand: same block every grid step -> DMA'd once, stays in VMEM.
    return pl.BlockSpec(shape, lambda i: (0,) * len(shape))


def _bn_scale_shift(arrays, x):
    # Full-batch BatchNorm1d training statistics (biased variance, like torch),
    # folded into per-feature scale/shift. Hoisted out of the gridded kernel so
    # the stats stay exact for any batch size. Two-pass variance for stability.
    mean = jnp.mean(x, axis=0, keepdims=True)
    var = jnp.mean(jnp.square(x - mean), axis=0, keepdims=True)
    scale = jax.lax.rsqrt(var + BN_EPS) * arrays["gamma"]
    shift = arrays["beta"] - mean * scale
    return scale, shift


def _batch_tile(B):
    return B if B <= MAX_BATCH_TILE else MAX_BATCH_TILE


@jax.jit
def _actor_forward(arrays, x):
    B, d_in = x.shape
    h1d = arrays["w1t"].shape[1]
    h2d, out_dim = arrays["w3t"].shape
    scale, shift = _bn_scale_shift(arrays, x)

    TB = _batch_tile(B)
    grid = (pl.cdiv(B, TB),)
    in_specs = [
        pl.BlockSpec((TB, d_in), lambda i: (i, 0)),       # x: streamed per tile
        _const_spec((1, d_in)), _const_spec((1, d_in)),    # scale, shift
        _const_spec((d_in, h1d)), _const_spec((1, h1d)),   # w1, b1
        _const_spec((h1d, h2d)), _const_spec((1, h2d)),    # w2, b2
        _const_spec((h2d, out_dim)), _const_spec((1, out_dim)),  # w3, b3
    ]
    out_specs = pl.BlockSpec((TB, out_dim), lambda i: (i, 0))

    flops = 2 * B * (d_in * h1d + h1d * h2d + h2d * out_dim)
    bytes_accessed = int(4 * x.size + 4 * B * out_dim
                         + sum(int(a.size) * a.dtype.itemsize
                               for a in arrays.values()))
    return pl.pallas_call(
        actor_kernel,
        grid=grid,
        in_specs=in_specs,
        out_specs=out_specs,
        out_shape=jax.ShapeDtypeStruct((B, out_dim), jnp.float32),
        compiler_params=pltpu.CompilerParams(
            dimension_semantics=("parallel",)),        # v7x megacore sharding
        cost_estimate=pl.CostEstimate(flops=flops,
                                      transcendentals=B * out_dim,
                                      bytes_accessed=bytes_accessed),
    )(x, scale, shift,
      arrays["w1t"], arrays["b1"], arrays["w2t"], arrays["b2"],
      arrays["w3t"], arrays["b3"])


@jax.jit
def _critic_forward(arrays, x, x_action):
    B, d_in = x.shape
    a_dim = x_action.shape[1]
    h1d = arrays["w1t"].shape[1]
    h2d, out_dim = arrays["w3t"].shape
    scale, shift = _bn_scale_shift(arrays, x)

    TB = _batch_tile(B)
    grid = (pl.cdiv(B, TB),)
    in_specs = [
        pl.BlockSpec((TB, d_in), lambda i: (i, 0)),        # x
        pl.BlockSpec((TB, a_dim), lambda i: (i, 0)),       # action
        _const_spec((1, d_in)), _const_spec((1, d_in)),     # scale, shift
        _const_spec((d_in, h1d)), _const_spec((1, h1d)),    # w1, b1
        _const_spec((h1d, h2d)), _const_spec((a_dim, h2d)), # w2a, w2b
        _const_spec((1, h2d)),                              # b2
        _const_spec((h2d, out_dim)), _const_spec((1, out_dim)),  # w3, b3
    ]
    out_specs = pl.BlockSpec((TB, out_dim), lambda i: (i, 0))

    flops = 2 * B * (d_in * h1d + (h1d + a_dim) * h2d + h2d * out_dim)
    bytes_accessed = int(4 * (x.size + x_action.size + B * out_dim)
                         + sum(int(a.size) * a.dtype.itemsize
                               for a in arrays.values()))
    return pl.pallas_call(
        critic_kernel,
        grid=grid,
        in_specs=in_specs,
        out_specs=out_specs,
        out_shape=jax.ShapeDtypeStruct((B, out_dim), jnp.float32),
        compiler_params=pltpu.CompilerParams(
            dimension_semantics=("parallel",)),
        cost_estimate=pl.CostEstimate(flops=flops,
                                      transcendentals=0,
                                      bytes_accessed=bytes_accessed),
    )(x, x_action, scale, shift,
      arrays["w1t"], arrays["b1"], arrays["w2a"], arrays["w2b"], arrays["b2"],
      arrays["w3t"], arrays["b3"])


def network_forward(params, x, x_action_critic=None):
    if params["actor"]:
        return _actor_forward(params["arrays"], x)
    return _critic_forward(params["arrays"], x, x_action_critic)


# ------------------------------ reference -----------------------------------


def _reference_forward(params, x, x_action_critic=None):
    a = params["arrays"]
    f32 = lambda w: w.astype(jnp.float32)
    mean = jnp.mean(x, axis=0, keepdims=True)
    var = jnp.mean(jnp.square(x - mean), axis=0, keepdims=True)
    bn = (x - mean) * jax.lax.rsqrt(var + BN_EPS) * a["gamma"] + a["beta"]
    h1 = _leaky_relu(bn @ f32(a["w1t"]) + a["b1"])
    if params["actor"]:
        h2 = _leaky_relu(h1 @ f32(a["w2t"]) + a["b2"])
        return jnp.tanh(h2 @ f32(a["w3t"]) + a["b3"])
    # reference uses a true concat to cross-check the split-W2 trick
    w2t = jnp.concatenate([f32(a["w2a"]), f32(a["w2b"])], axis=0)
    h1_cat = jnp.concatenate([h1, x_action_critic], axis=1)
    h2 = _leaky_relu(h1_cat @ w2t + a["b2"])
    return h2 @ f32(a["w3t"]) + a["b3"]


if __name__ == "__main__":
    key = jax.random.PRNGKey(0)
    k_x, k_a, k_pc, k_pa = jax.random.split(key, 4)

    B, input_dim = 8, 24
    hidden_in_dim, hidden_out_dim = 64, 64
    action_size = 16
    critic_out_dim = 1
    actor_out_dim = action_size

    x = jax.random.normal(k_x, (B, input_dim), jnp.float32)
    x_action = jax.random.normal(k_a, (B, action_size), jnp.float32)

    # critic (actor=False): output is fc3(h2), includes concat with action
    critic_params = init_network_params(k_pc, input_dim, hidden_in_dim,
                                        hidden_out_dim, critic_out_dim,
                                        actor=False, action_size=action_size)
    out_critic = network_forward(critic_params, x, x_action)
    jax.block_until_ready(out_critic)

    # actor (actor=True): output is tanh(fc3(h2))
    actor_params = init_network_params(k_pa, input_dim, hidden_in_dim,
                                       hidden_out_dim, actor_out_dim,
                                       actor=True)
    out_actor = network_forward(actor_params, x)
    jax.block_until_ready(out_actor)

    ref_c = _reference_forward(critic_params, x, x_action)
    ref_a = _reference_forward(actor_params, x)
    assert out_critic.shape == (B, critic_out_dim)
    assert out_actor.shape == (B, actor_out_dim)
    # tolerance covers bf16 matmul operands (f32 accumulation)
    assert np.allclose(np.asarray(out_critic), np.asarray(ref_c),
                       atol=5e-3, rtol=5e-3)
    assert np.allclose(np.asarray(out_actor), np.asarray(ref_a),
                       atol=5e-3, rtol=5e-3)

    print("KERNEL_OK")
</pallas_src>

<mosaic_0001>
module attributes {stable_mosaic.version = 11 : i64} {
  func.func @critic_kernel(%arg0: i32, %arg1: memref<8x24xf32, #tpu.memory_space<vmem>>, %arg2: memref<8x16xf32, #tpu.memory_space<vmem>>, %arg3: memref<1x24xf32, #tpu.memory_space<vmem>>, %arg4: memref<1x24xf32, #tpu.memory_space<vmem>>, %arg5: memref<24x48xbf16, #tpu.memory_space<vmem>>, %arg6: memref<1x48xf32, #tpu.memory_space<vmem>>, %arg7: memref<48x64xbf16, #tpu.memory_space<vmem>>, %arg8: memref<16x64xbf16, #tpu.memory_space<vmem>>, %arg9: memref<1x64xf32, #tpu.memory_space<vmem>>, %arg10: memref<64x1xbf16, #tpu.memory_space<vmem>>, %arg11: memref<1x1xf32, #tpu.memory_space<vmem>>, %arg12: memref<8x1xf32, #tpu.memory_space<vmem>>) attributes {dimension_semantics = [#tpu.dimension_semantics<parallel>], iteration_bounds = array<i64: 1>, scalar_prefetch = 0 : i64, scratch_operands = 0 : i64, tpu.core_type = #tpu.core_type<tc>, window_params = [{transform_indices = @transform_0, window_bounds = array<i64: 8, 24>}, {transform_indices = @transform_1, window_bounds = array<i64: 8, 16>}, {pipeline_mode = #tpu.pipeline_mode<synchronous>, transform_indices = @transform_2, window_bounds = array<i64: 1, 24>}, {pipeline_mode = #tpu.pipeline_mode<synchronous>, transform_indices = @transform_3, window_bounds = array<i64: 1, 24>}, {pipeline_mode = #tpu.pipeline_mode<synchronous>, transform_indices = @transform_4, window_bounds = array<i64: 24, 48>}, {pipeline_mode = #tpu.pipeline_mode<synchronous>, transform_indices = @transform_5, window_bounds = array<i64: 1, 48>}, {pipeline_mode = #tpu.pipeline_mode<synchronous>, transform_indices = @transform_6, window_bounds = array<i64: 48, 64>}, {pipeline_mode = #tpu.pipeline_mode<synchronous>, transform_indices = @transform_7, window_bounds = array<i64: 16, 64>}, {pipeline_mode = #tpu.pipeline_mode<synchronous>, transform_indices = @transform_8, window_bounds = array<i64: 1, 64>}, {pipeline_mode = #tpu.pipeline_mode<synchronous>, transform_indices = @transform_9, window_bounds = array<i64: 64, 1>}, {pipeline_mode = #tpu.pipeline_mode<synchronous>, transform_indices = @transform_10, window_bounds = array<i64: 1, 1>}, {transform_indices = @transform_11, window_bounds = array<i64: 8, 1>}]} {
    %c0 = arith.constant 0 : index
    %c0_0 = arith.constant 0 : index
    %0 = vector.load %arg1[%c0, %c0_0] : memref<8x24xf32, #tpu.memory_space<vmem>>, vector<8x24xf32>
    %c0_1 = arith.constant 0 : index
    %c0_2 = arith.constant 0 : index
    %1 = vector.load %arg3[%c0_1, %c0_2] : memref<1x24xf32, #tpu.memory_space<vmem>>, vector<1x24xf32>
    %2 = vector.broadcast %1 : vector<1x24xf32> to vector<8x24xf32>
    %3 = arith.mulf %0, %2 : vector<8x24xf32>
    %c0_3 = arith.constant 0 : index
    %c0_4 = arith.constant 0 : index
    %4 = vector.load %arg4[%c0_3, %c0_4] : memref<1x24xf32, #tpu.memory_space<vmem>>, vector<1x24xf32>
    %5 = vector.broadcast %4 : vector<1x24xf32> to vector<8x24xf32>
    %6 = arith.addf %3, %5 : vector<8x24xf32>
    %7 = arith.truncf %6 : vector<8x24xf32> to vector<8x24xbf16>
    %c0_5 = arith.constant 0 : index
    %c0_6 = arith.constant 0 : index
    %8 = vector.load %arg5[%c0_5, %c0_6] : memref<24x48xbf16, #tpu.memory_space<vmem>>, vector<24x48xbf16>
    %cst = arith.constant dense<0.000000e+00> : vector<8x48xf32>
    %9 = tpu.matmul %7, %8, %cst {dimension_numbers = #tpu.dot_dimension_numbers<[1], [0], [0], [1], [0, 0, 1, 1], [], []>} : vector<8x24xbf16>, vector<24x48xbf16>, vector<8x48xf32> -> vector<8x48xf32>
    %c0_7 = arith.constant 0 : index
    %c0_8 = arith.constant 0 : index
    %10 = vector.load %arg6[%c0_7, %c0_8] : memref<1x48xf32, #tpu.memory_space<vmem>>, vector<1x48xf32>
    %11 = vector.broadcast %10 : vector<1x48xf32> to vector<8x48xf32>
    %12 = arith.addf %9, %11 : vector<8x48xf32>
    %cst_9 = arith.constant 0.00999999977 : f32
    %13 = vector.broadcast %cst_9 : f32 to vector<8x48xf32>
    %14 = arith.mulf %13, %12 : vector<8x48xf32>
    %15 = arith.maximumf %12, %14 : vector<8x48xf32>
    %16 = arith.truncf %15 : vector<8x48xf32> to vector<8x48xbf16>
    %c0_10 = arith.constant 0 : index
    %c0_11 = arith.constant 0 : index
    %17 = vector.load %arg7[%c0_10, %c0_11] : memref<48x64xbf16, #tpu.memory_space<vmem>>, vector<48x64xbf16>
    %cst_12 = arith.constant dense<0.000000e+00> : vector<8x64xf32>
    %18 = tpu.matmul %16, %17, %cst_12 {dimension_numbers = #tpu.dot_dimension_numbers<[1], [0], [0], [1], [0, 0, 1, 1], [], []>} : vector<8x48xbf16>, vector<48x64xbf16>, vector<8x64xf32> -> vector<8x64xf32>
    %c0_13 = arith.constant 0 : index
    %c0_14 = arith.constant 0 : index
    %19 = vector.load %arg2[%c0_13, %c0_14] : memref<8x16xf32, #tpu.memory_space<vmem>>, vector<8x16xf32>
    %20 = arith.truncf %19 : vector<8x16xf32> to vector<8x16xbf16>
    %c0_15 = arith.constant 0 : index
    %c0_16 = arith.constant 0 : index
    %21 = vector.load %arg8[%c0_15, %c0_16] : memref<16x64xbf16, #tpu.memory_space<vmem>>, vector<16x64xbf16>
    %cst_17 = arith.constant dense<0.000000e+00> : vector<8x64xf32>
    %22 = tpu.matmul %20, %21, %cst_17 {dimension_numbers = #tpu.dot_dimension_numbers<[1], [0], [0], [1], [0, 0, 1, 1], [], []>} : vector<8x16xbf16>, vector<16x64xbf16>, vector<8x64xf32> -> vector<8x64xf32>
    %23 = arith.addf %18, %22 : vector<8x64xf32>
    %c0_18 = arith.constant 0 : index
    %c0_19 = arith.constant 0 : index
    %24 = vector.load %arg9[%c0_18, %c0_19] : memref<1x64xf32, #tpu.memory_space<vmem>>, vector<1x64xf32>
    %25 = vector.broadcast %24 : vector<1x64xf32> to vector<8x64xf32>
    %26 = arith.addf %23, %25 : vector<8x64xf32>
    %cst_20 = arith.constant 0.00999999977 : f32
    %27 = vector.broadcast %cst_20 : f32 to vector<8x64xf32>
    %28 = arith.mulf %27, %26 : vector<8x64xf32>
    %29 = arith.maximumf %26, %28 : vector<8x64xf32>
    %30 = arith.truncf %29 : vector<8x64xf32> to vector<8x64xbf16>
    %c0_21 = arith.constant 0 : index
    %c0_22 = arith.constant 0 : index
    %31 = vector.load %arg10[%c0_21, %c0_22] : memref<64x1xbf16, #tpu.memory_space<vmem>>, vector<64x1xbf16>
    %cst_23 = arith.constant dense<0.000000e+00> : vector<8x1xf32>
    %32 = tpu.matmul %30, %31, %cst_23 {dimension_numbers = #tpu.dot_dimension_numbers<[1], [0], [0], [1], [0, 0, 1, 1], [], []>} : vector<8x64xbf16>, vector<64x1xbf16>, vector<8x1xf32> -> vector<8x1xf32>
    %c0_24 = arith.constant 0 : index
    %c0_25 = arith.constant 0 : index
    %33 = vector.load %arg11[%c0_24, %c0_25] : memref<1x1xf32, #tpu.memory_space<vmem>>, vector<1x1xf32>
    %34 = vector.broadcast %33 : vector<1x1xf32> to vector<8x1xf32>
    %35 = arith.addf %32, %34 : vector<8x1xf32>
    %c0_26 = arith.constant 0 : index
    %c0_27 = arith.constant 0 : index
    %36 = vector.load %arg12[%c0_26, %c0_27] : memref<8x1xf32, #tpu.memory_space<vmem>>, vector<8x1xf32>
    tpu.vector_store %arg12[%c0_26, %c0_27], %35 {strides = array<i32>} : memref<8x1xf32, #tpu.memory_space<vmem>>, vector<8x1xf32>,
    return
  }
  func.func @transform_0(%arg0: i32) -> (i32, i32) {
    %c0_i32 = arith.constant 0 : i32
    %c0_i32_0 = arith.constant 0 : i32
    return %arg0, %c0_i32 : i32, i32
  }
  func.func @transform_1(%arg0: i32) -> (i32, i32) {
    %c0_i32 = arith.constant 0 : i32
    %c0_i32_0 = arith.constant 0 : i32
    return %arg0, %c0_i32 : i32, i32
  }
  func.func @transform_2(%arg0: i32) -> (i32, i32) {
    %c0_i32 = arith.constant 0 : i32
    %c0_i32_0 = arith.constant 0 : i32
    %c0_i32_1 = arith.constant 0 : i32
    return %c0_i32, %c0_i32_0 : i32, i32
  }
  func.func @transform_3(%arg0: i32) -> (i32, i32) {
    %c0_i32 = arith.constant 0 : i32
    %c0_i32_0 = arith.constant 0 : i32
    %c0_i32_1 = arith.constant 0 : i32
    return %c0_i32, %c0_i32_0 : i32, i32
  }
  func.func @transform_4(%arg0: i32) -> (i32, i32) {
    %c0_i32 = arith.constant 0 : i32
    %c0_i32_0 = arith.constant 0 : i32
    %c0_i32_1 = arith.constant 0 : i32
    return %c0_i32, %c0_i32_0 : i32, i32
  }
  func.func @transform_5(%arg0: i32) -> (i32, i32) {
    %c0_i32 = arith.constant 0 : i32
    %c0_i32_0 = arith.constant 0 : i32
    %c0_i32_1 = arith.constant 0 : i32
    return %c0_i32, %c0_i32_0 : i32, i32
  }
  func.func @transform_6(%arg0: i32) -> (i32, i32) {
    %c0_i32 = arith.constant 0 : i32
    %c0_i32_0 = arith.constant 0 : i32
    %c0_i32_1 = arith.constant 0 : i32
    return %c0_i32, %c0_i32_0 : i32, i32
  }
  func.func @transform_7(%arg0: i32) -> (i32, i32) {
    %c0_i32 = arith.constant 0 : i32
    %c0_i32_0 = arith.constant 0 : i32
    %c0_i32_1 = arith.constant 0 : i32
    return %c0_i32, %c0_i32_0 : i32, i32
  }
  func.func @transform_8(%arg0: i32) -> (i32, i32) {
    %c0_i32 = arith.constant 0 : i32
    %c0_i32_0 = arith.constant 0 : i32
    %c0_i32_1 = arith.constant 0 : i32
    return %c0_i32, %c0_i32_0 : i32, i32
  }
  func.func @transform_9(%arg0: i32) -> (i32, i32) {
    %c0_i32 = arith.constant 0 : i32
    %c0_i32_0 = arith.constant 0 : i32
    %c0_i32_1 = arith.constant 0 : i32
    return %c0_i32, %c0_i32_0 : i32, i32
  }
  func.func @transform_10(%arg0: i32) -> (i32, i32) {
    %c0_i32 = arith.constant 0 : i32
    %c0_i32_0 = arith.constant 0 : i32
    %c0_i32_1 = arith.constant 0 : i32
    return %c0_i32, %c0_i32_0 : i32, i32
  }
  func.func @transform_11(%arg0: i32) -> (i32, i32) {
    %c0_i32 = arith.constant 0 : i32
    %c0_i32_0 = arith.constant 0 : i32
    return %arg0, %c0_i32 : i32, i32
  }
}

</mosaic_0001>

<llo_original>
// kernel: _critic_forward.1
$region0: #{_critic_forward.1}
  #allocation0 [shape = 'u32[]', space=smem, size = 0x4, offset = 0x4, fixed_abs, tag = 'smem constant byte address 0x4 - core index']
  #allocation1 [shape = 'u32[144,128]{1,0:T(1,128)}', space=vmem, size = 0x12000, scoped, tag = 'internal scratch']
  #allocation2 [shape = 'f32[1,1]{1,0:T(1,128)S(1)}', space=vmem, size = 0x200, scoped, tag = 'scoped memory for _critic_forward.1']
  %s0 = inlined_call_operand.vmem [shape: f32[8,24], index: 0, kind: input, shape index: {}]
  %s1 = inlined_call_operand.vmem [shape: f32[8,16], index: 1, kind: input, shape index: {}]
  %s2 = inlined_call_operand.vmem [shape: f32[1,24], index: 2, kind: input, shape index: {}]
  %s3 = inlined_call_operand.vmem [shape: f32[1,24], index: 3, kind: input, shape index: {}]
  %s4 = inlined_call_operand.vmem [shape: bf16[24,48], index: 4, kind: input, shape index: {}]
  %s5 = inlined_call_operand.vmem [shape: f32[1,48], index: 5, kind: input, shape index: {}]
  %s6 = inlined_call_operand.vmem [shape: bf16[48,64], index: 6, kind: input, shape index: {}]
  %s7 = inlined_call_operand.vmem [shape: bf16[16,64], index: 7, kind: input, shape index: {}]
  %s8 = inlined_call_operand.vmem [shape: f32[1,64], index: 8, kind: input, shape index: {}]
  %s9 = inlined_call_operand.vmem [shape: bf16[64,1], index: 9, kind: input, shape index: {}]
  %s10 = inlined_call_operand.<no memory space> [shape: f32[1,1], index: 10, kind: input, shape index: {}]
  %s11 = inlined_call_operand.vmem [shape: f32[8,1], index: 11, kind: output, shape index: {}]
  %s12 = sld [smem:[#allocation0]]
  $region54: #{_critic_forward.1} parent=0
    _
  %s14 = ssub.s32 1, %s12
  %s15 = scalar_select 0, %s14, %s12
  %v16 = vstv %s10
  %17 = vst [vmem:[#allocation2] sm:$0x1] %v16
  // Predicated region
  $region2: #{_critic_forward.1} parent=0 // pred_check
    _
  $region3: #{_critic_forward.1} parent=0 // pred_check_branch
    %19 = sbr.rel (0) target = $region5
  $region4: #{_critic_forward.1} parent=0 // pred_region
    _
  $region5: #{_critic_forward.1} parent=0 // pred_fallthru
    _
  // Predicated region
  $region6: #{_critic_forward.1} parent=0 // pred_check
    _
  $region7: #{_critic_forward.1} parent=0 // pred_check_branch
    %21 = sbr.rel (0) target = $region9
  $region8: #{_critic_forward.1} parent=0 // pred_region
    _
  $region9: #{_critic_forward.1} parent=0 // pred_fallthru
    _
  // Predicated region
  $region10: #{_critic_forward.1} parent=0 // pred_check
    _
  $region11: #{_critic_forward.1} parent=0 // pred_check_branch
    %23 = sbr.rel (0) target = $region13
  $region12: #{_critic_forward.1} parent=0 // pred_region
    _
  $region13: #{_critic_forward.1} parent=0 // pred_fallthru
    _
  // Predicated region
  $region14: #{_critic_forward.1} parent=0 // pred_check
    _
  $region15: #{_critic_forward.1} parent=0 // pred_check_branch
    %25 = sbr.rel (0) target = $region17
  $region16: #{_critic_forward.1} parent=0 // pred_region
    _
  $region17: #{_critic_forward.1} parent=0 // pred_fallthru
    _
  // Predicated region
  $region18: #{_critic_forward.1} parent=0 // pred_check
    _
  $region19: #{_critic_forward.1} parent=0 // pred_check_branch
    %27 = sbr.rel (0) target = $region21
  $region20: #{_critic_forward.1} parent=0 // pred_region
    _
  $region21: #{_critic_forward.1} parent=0 // pred_fallthru
    _
  // Predicated region
  $region22: #{_critic_forward.1} parent=0 // pred_check
    _
  $region23: #{_critic_forward.1} parent=0 // pred_check_branch
    %29 = sbr.rel (0) target = $region25
  $region24: #{_critic_forward.1} parent=0 // pred_region
    _
  $region25: #{_critic_forward.1} parent=0 // pred_fallthru
    _
  // Predicated region
  $region26: #{_critic_forward.1} parent=0 // pred_check
    _
  $region27: #{_critic_forward.1} parent=0 // pred_check_branch
    %31 = sbr.rel (0) target = $region29
  $region28: #{_critic_forward.1} parent=0 // pred_region
    _
  $region29: #{_critic_forward.1} parent=0 // pred_fallthru
    _
  // Predicated region
  $region30: #{_critic_forward.1} parent=0 // pred_check
    _
  $region31: #{_critic_forward.1} parent=0 // pred_check_branch
    %33 = sbr.rel (0) target = $region33
  $region32: #{_critic_forward.1} parent=0 // pred_region
    _
  $region33: #{_critic_forward.1} parent=0 // pred_fallthru
    _
  // Predicated region
  $region34: #{_critic_forward.1} parent=0 // pred_check
    _
  $region35: #{_critic_forward.1} parent=0 // pred_check_branch
    %35 = sbr.rel (0) target = $region37
  $region36: #{_critic_forward.1} parent=0 // pred_region
    _
  $region37: #{_critic_forward.1} parent=0 // pred_fallthru
    _
  // Predicated region
  $region38: #{_critic_forward.1} parent=0 // pred_check
    _
  $region39: #{_critic_forward.1} parent=0 // pred_check_branch
    %37 = sbr.rel (0) target = $region41
  $region40: #{_critic_forward.1} parent=0 // pred_region
    _
  $region41: #{_critic_forward.1} parent=0 // pred_fallthru
    _
  // Predicated region
  $region42: #{_critic_forward.1} parent=0 // pred_check
    _
  $region43: #{_critic_forward.1} parent=0 // pred_check_branch
    %39 = sbr.rel (0) target = $region45
  $region44: #{_critic_forward.1} parent=0 // pred_region
    _
  $region45: #{_critic_forward.1} parent=0 // pred_fallthru
    _
  %v41 = vld [vmem:[%s0] sm:$0xff]
  %v42 = vld [vmem:[%s2] sm:$0x1]
  %v44 = vlaneseq
  %v45 = vshrl.u32 %v44, 7
  %v46 = vsub.s32 0, %v45
  %v47 = vrot.slane %v42, %v46
  %v49 = vmul.f32 %v41, %v47
  %v50 = vld [vmem:[%s3] sm:$0x1]
  %v52 = vlaneseq
  %v53 = vshrl.u32 %v52, 7
  %v54 = vsub.s32 0, %v53
  %v55 = vrot.slane %v50, %v54
  %v57 = vadd.f32 %v49, %v55
  %v58 = vpack.c.bf16 %v57, %v57
  %v59 = vld [vmem:[%s4] sm:$0xf]
  %v60 = vld [vmem:[%s4 + $0x4] sm:$0xf]
  %v61 = vld [vmem:[%s4 + $0x8] sm:$0xf]
  %v62 = vld [vmem:[%s5] sm:$0x1]
  %v64 = vlaneseq
  %v65 = vshrl.u32 %v64, 7
  %v66 = vsub.s32 0, %v65
  %v67 = vrot.slane %v62, %v66
  %v72 = vunpack.c.l.b16 %v59
  %v73 = vunpack.c.l.b16 %v60
  %v74 = vunpack.c.l.b16 %v61
  %v75 = vpack.c.b16 %v73, %v72
  %v76 = vpack.c.b16 %v74, %v74
  %vm78 = vcmask 195584
  %v80 = vsel %vm78, %v58, 0
  %vm82 = vcmask 1043456
  %v84 = vsel %vm82, %v76, 0
  %86 = vmatprep.subr.bf16.mxu0 0
  %87 = vmatpush1.bf16.msra.mxu0 0
  %88 = vmatprep.subr.bf16.mxu0 0
  %89 = vmatpush1.bf16.msra.mxu0 0
  %90 = vmatprep.subr.bf16.mxu0 0
  %91 = vmatpush1.bf16.msra.mxu0 0
  %92 = vmatprep.subr.bf16.mxu0 0
  %93 = vmatpush1.bf16.msra.mxu0 0
  %94 = vmatprep.subr.bf16.mxu0 0
  %95 = vmatpush1.bf16.msra.mxu0 0
  %96 = vmatprep.subr.bf16.mxu0 0
  %97 = vmatpush1.bf16.msra.mxu0 0
  %98 = vmatprep.subr.bf16.mxu0 0
  %99 = vmatpush1.bf16.msra.mxu0 %v84
  %100 = vmatprep.subr.bf16.mxu0 0
  %101 = vmatpush1.bf16.msra.mxu0 %v75
  %102 = vmatprep.subr.bf16.mxu0 0
  %103 = vmatpush2.bf16.msra.mxu0 0
  %104 = vmatprep.subr.bf16.mxu0 0
  %105 = vmatpush2.bf16.msra.mxu0 0
  %106 = vmatprep.subr.bf16.mxu0 0
  %107 = vmatpush2.bf16.msra.mxu0 0
  %108 = vmatprep.subr.bf16.mxu0 0
  %109 = vmatpush2.bf16.msra.mxu0 0
  %110 = vmatprep.subr.bf16.mxu0 0
  %111 = vmatpush2.bf16.msra.mxu0 0
  %112 = vmatprep.subr.bf16.mxu0 0
  %113 = vmatpush2.bf16.msra.mxu0 0
  %114 = vmatprep.subr.bf16.mxu0 0
  %115 = vmatpush2.bf16.msra.mxu0 0
  %116 = vmatprep.subr.bf16.mxu0 0
  %117 = vmatpush2.bf16.msra.mxu0 0
  %118 = vmatprep.mubr.bf16.mxu0 0
  %119 = vmatmul.mubr.bf16.gmra.mxu0 %v80
  %v120 = vpop.f32.mrf.mxu0
  %v121 = vadd.f32 %v67, %v120
  %v122 = vpop.f32.mrf.mxu0
  %v123 = vpop.f32.mrf.mxu0
  %v124 = vpop.f32.mrf.mxu0
  %125 = vdwg.mxu0
  %v126 = vmul.f32 %v121, 0.01
  %v127 = vmax.f32 %v121, %v126
  %v128 = vpack.c.bf16 %v127, %v127
  %v129 = vld [vmem:[%s6] sm:$0xf]
  %v130 = vld [vmem:[%s6 + $0x4] sm:$0xf]
  %v131 = vld [vmem:[%s6 + $0x8] sm:$0xf]
  %v132 = vld [vmem:[%s6 + $0xc] sm:$0xf]
  %v133 = vld [vmem:[%s6 + $0x10] sm:$0xf]
  %v134 = vld [vmem:[%s6 + $0x14] sm:$0xf]
  %v135 = vld [vmem:[%s1] sm:$0xff]
  %v136 = vpack.c.bf16 %v135, %v135
  %v137 = vld [vmem:[%s7] sm:$0xf]
  %v138 = vld [vmem:[%s7 + $0x4] sm:$0xf]
  %v141 = vunpack.c.l.b16 %v137
  %v142 = vunpack.c.l.b16 %v138
  %v143 = vpack.c.b16 %v142, %v141
  %vm145 = vcmask 130048
  %v147 = vsel %vm145, %v136, 0
  %149 = vmatprep.subr.bf16.mxu0 0
  %150 = vmatpush1.bf16.msra.mxu0 0
  %151 = vmatprep.subr.bf16.mxu0 0
  %152 = vmatpush1.bf16.msra.mxu0 0
  %153 = vmatprep.subr.bf16.mxu0 0
  %154 = vmatpush1.bf16.msra.mxu0 0
  %155 = vmatprep.subr.bf16.mxu0 0
  %156 = vmatpush1.bf16.msra.mxu0 0
  %157 = vmatprep.subr.bf16.mxu0 0
  %158 = vmatpush1.bf16.msra.mxu0 0
  %159 = vmatprep.subr.bf16.mxu0 0
  %160 = vmatpush1.bf16.msra.mxu0 0
  %161 = vmatprep.subr.bf16.mxu0 0
  %162 = vmatpush1.bf16.msra.mxu0 0
  %163 = vmatprep.subr.bf16.mxu0 0
  %164 = vmatpush1.bf16.msra.mxu0 %v143
  %165 = vmatprep.subr.bf16.mxu0 0
  %166 = vmatpush2.bf16.msra.mxu0 0
  %167 = vmatprep.subr.bf16.mxu0 0
  %168 = vmatpush2.bf16.msra.mxu0 0
  %169 = vmatprep.subr.bf16.mxu0 0
  %170 = vmatpush2.bf16.msra.mxu0 0
  %171 = vmatprep.subr.bf16.mxu0 0
  %172 = vmatpush2.bf16.msra.mxu0 0
  %173 = vmatprep.subr.bf16.mxu0 0
  %174 = vmatpush2.bf16.msra.mxu0 0
  %175 = vmatprep.subr.bf16.mxu0 0
  %176 = vmatpush2.bf16.msra.mxu0 0
  %177 = vmatprep.subr.bf16.mxu0 0
  %178 = vmatpush2.bf16.msra.mxu0 0
  %179 = vmatprep.subr.bf16.mxu0 0
  %180 = vmatpush2.bf16.msra.mxu0 0
  %181 = vmatprep.mubr.bf16.mxu0 0
  %182 = vmatmul.mubr.bf16.gmra.mxu0 %v147
  %v183 = vpop.f32.mrf.mxu0
  %v184 = vadd.f32 0.0, %v183
  %v185 = vpop.f32.mrf.mxu0
  %v186 = vpop.f32.mrf.mxu0
  %v187 = vpop.f32.mrf.mxu0
  %188 = vdwg.mxu0
  %v195 = vunpack.c.l.b16 %v129
  %v196 = vunpack.c.l.b16 %v130
  %v197 = vunpack.c.l.b16 %v131
  %v198 = vunpack.c.l.b16 %v132
  %v199 = vunpack.c.l.b16 %v133
  %v200 = vunpack.c.l.b16 %v134
  %v201 = vpack.c.b16 %v196, %v195
  %v202 = vpack.c.b16 %v198, %v197
  %v203 = vpack.c.b16 %v200, %v199
  %vm207 = vcmask 392192
  %v209 = vsel %vm207, %v128, 0
  %211 = vmatprep.subr.bf16.mxu0 0
  %212 = vmatpush1.bf16.msra.mxu0 0
  %213 = vmatprep.subr.bf16.mxu0 0
  %214 = vmatpush1.bf16.msra.mxu0 0
  %215 = vmatprep.subr.bf16.mxu0 0
  %216 = vmatpush1.bf16.msra.mxu0 0
  %217 = vmatprep.subr.bf16.mxu0 0
  %218 = vmatpush1.bf16.msra.mxu0 0
  %219 = vmatprep.subr.bf16.mxu0 0
  %220 = vmatpush1.bf16.msra.mxu0 0
  %221 = vmatprep.subr.bf16.mxu0 0
  %222 = vmatpush1.bf16.msra.mxu0 %v203
  %223 = vmatprep.subr.bf16.mxu0 0
  %224 = vmatpush1.bf16.msra.mxu0 %v202
  %225 = vmatprep.subr.bf16.mxu0 0
  %226 = vmatpush1.bf16.msra.mxu0 %v201
  %227 = vmatprep.subr.bf16.mxu0 0
  %228 = vmatpush2.bf16.msra.mxu0 0
  %229 = vmatprep.subr.bf16.mxu0 0
  %230 = vmatpush2.bf16.msra.mxu0 0
  %231 = vmatprep.subr.bf16.mxu0 0
  %232 = vmatpush2.bf16.msra.mxu0 0
  %233 = vmatprep.subr.bf16.mxu0 0
  %234 = vmatpush2.bf16.msra.mxu0 0
  %235 = vmatprep.subr.bf16.mxu0 0
  %236 = vmatpush2.bf16.msra.mxu0 0
  %237 = vmatprep.subr.bf16.mxu0 0
  %238 = vmatpush2.bf16.msra.mxu0 0
  %239 = vmatprep.subr.bf16.mxu0 0
  %240 = vmatpush2.bf16.msra.mxu0 0
  %241 = vmatprep.subr.bf16.mxu0 0
  %242 = vmatpush2.bf16.msra.mxu0 0
  %243 = vmatprep.mubr.bf16.mxu0 0
  %244 = vmatmul.mubr.bf16.gmra.mxu0 %v209
  %v245 = vpop.f32.mrf.mxu0
  %v246 = vadd.f32 %v184, %v245
  %v247 = vpop.f32.mrf.mxu0
  %v248 = vpop.f32.mrf.mxu0
  %v249 = vpop.f32.mrf.mxu0
  %250 = vdwg.mxu0
  %v251 = vld [vmem:[%s8] sm:$0x1]
  %v253 = vlaneseq
  %v254 = vshrl.u32 %v253, 7
  %v255 = vsub.s32 0, %v254
  %v256 = vrot.slane %v251, %v255
  %v258 = vadd.f32 %v246, %v256
  %v259 = vmul.f32 %v258, 0.01
  %v260 = vmax.f32 %v258, %v259
  %v261 = vpack.c.bf16 %v260, %v260
  %v262 = vld [vmem:[%s9] sm:$0xf]
  %v263 = vld [vmem:[%s9 + $0x4] sm:$0xf]
  %v264 = vld [vmem:[%s9 + $0x8] sm:$0xf]
  %v265 = vld [vmem:[%s9 + $0xc] sm:$0xf]
  %v266 = vld [vmem:[%s9 + $0x10] sm:$0xf]
  %v267 = vld [vmem:[%s9 + $0x14] sm:$0xf]
  %v268 = vld [vmem:[%s9 + $0x18] sm:$0xf]
  %v269 = vld [vmem:[%s9 + $0x1c] sm:$0xf]
  %v270 = vld [vmem:[#allocation2] sm:$0x1]
  %v272 = vlaneseq
  %v273 = vshrl.u32 %v272, 7
  %v274 = vsub.s32 0, %v273
  %v275 = vrot.slane %v270, %v274
  %v285 = vunpack.c.l.b16 %v262
  %v286 = vunpack.c.l.b16 %v263
  %v287 = vunpack.c.l.b16 %v264
  %v288 = vunpack.c.l.b16 %v265
  %v289 = vunpack.c.l.b16 %v266
  %v290 = vunpack.c.l.b16 %v267
  %v291 = vunpack.c.l.b16 %v268
  %v292 = vunpack.c.l.b16 %v269
  %v293 = vpack.c.b16 %v286, %v285
  %v294 = vpack.c.b16 %v288, %v287
  %v295 = vpack.c.b16 %v290, %v289
  %v296 = vpack.c.b16 %v292, %v291
  %vm301 = vcmask 523264
  %v303 = vsel %vm301, %v261, 0
  %305 = vmatprep.subr.bf16.mxu0 0
  %306 = vmatpush1.bf16.msra.mxu0 0
  %307 = vmatprep.subr.bf16.mxu0 0
  %308 = vmatpush1.bf16.msra.mxu0 0
  %309 = vmatprep.subr.bf16.mxu0 0
  %310 = vmatpush1.bf16.msra.mxu0 0
  %311 = vmatprep.subr.bf16.mxu0 0
  %312 = vmatpush1.bf16.msra.mxu0 0
  %313 = vmatprep.subr.bf16.mxu0 0
  %314 = vmatpush1.bf16.msra.mxu0 %v296
  %315 = vmatprep.subr.bf16.mxu0 0
  %316 = vmatpush1.bf16.msra.mxu0 %v295
  %317 = vmatprep.subr.bf16.mxu0 0
  %318 = vmatpush1.bf16.msra.mxu0 %v294
  %319 = vmatprep.subr.bf16.mxu0 0
  %320 = vmatpush1.bf16.msra.mxu0 %v293
  %321 = vmatprep.subr.bf16.mxu0 0
  %322 = vmatpush2.bf16.msra.mxu0 0
  %323 = vmatprep.subr.bf16.mxu0 0
  %324 = vmatpush2.bf16.msra.mxu0 0
  %325 = vmatprep.subr.bf16.mxu0 0
  %326 = vmatpush2.bf16.msra.mxu0 0
  %327 = vmatprep.subr.bf16.mxu0 0
  %328 = vmatpush2.bf16.msra.mxu0 0
  %329 = vmatprep.subr.bf16.mxu0 0
  %330 = vmatpush2.bf16.msra.mxu0 0
  %331 = vmatprep.subr.bf16.mxu0 0
  %332 = vmatpush2.bf16.msra.mxu0 0
  %333 = vmatprep.subr.bf16.mxu0 0
  %334 = vmatpush2.bf16.msra.mxu0 0
  %335 = vmatprep.subr.bf16.mxu0 0
  %336 = vmatpush2.bf16.msra.mxu0 0
  %337 = vmatprep.mubr.bf16.mxu0 0
  %338 = vmatmul.mubr.bf16.gmra.mxu0 %v303
  %v339 = vpop.f32.mrf.mxu0
  %v340 = vadd.f32 %v275, %v339
  %v341 = vpop.f32.mrf.mxu0
  %v342 = vpop.f32.mrf.mxu0
  %v343 = vpop.f32.mrf.mxu0
  %344 = vdwg.mxu0
  %vm345 = vcmask 7168
  %346 = vst.msk [vmem:[%s11] sm:$0xff] %vm345, %v340
  // Predicated region
  $region46: #{_critic_forward.1} parent=0 // pred_check
    _
  $region47: #{_critic_forward.1} parent=0 // pred_check_branch
    %348 = sbr.rel (0) target = $region49
  $region48: #{_critic_forward.1} parent=0 // pred_region
    _
  $region49: #{_critic_forward.1} parent=0 // pred_fallthru
    _
  // Predicated region
  $region50: #{_critic_forward.1} parent=0 // pred_check
    _
  $region51: #{_critic_forward.1} parent=0 // pred_check_branch
    %350 = sbr.rel (0) target = $region53
  $region52: #{_critic_forward.1} parent=0 // pred_region
    _
  $region53: #{_critic_forward.1} parent=0 // pred_fallthru
    _

</llo_original>
